<compile_context>
chip_gen: v7x
topology: tpu7x:2x2x1
jax: 0.10.0
libtpu: 0.0.40
codegen_flags: <defaults>
</compile_context>

<pallas_src>
import functools

import jax
import jax.numpy as jnp
from jax.experimental import pallas as pl
from jax.experimental.pallas import tpu as pltpu


def _round_up(x, m):
    return (x + m - 1) // m * m


# ---------------------------------------------------------------------------
# Fused encoder + decoder kernel.
# Grid: (num_output_tiles,) over the concatenated [vocab | recipe] head.
# ---------------------------------------------------------------------------
def fused_recipe_kernel(pooled_ref, tags_ref, w1a_ref, w1b_ref, b1_ref,
                        w2_ref, b2_ref, wout_ref, bout_ref,
                        z_ref, out_ref):
    # ---- encoder (tiny; recomputed per tile so every grid step is
    #      independent and z stays in vregs/VMEM) -------------------------
    pooled = pooled_ref[...].astype(jnp.bfloat16)          # (B, D)
    tags = tags_ref[...].astype(jnp.bfloat16)              # (B, T_pad)
    h = jnp.dot(pooled, w1a_ref[...],
                preferred_element_type=jnp.float32)        # (B, H)
    h = h + jnp.dot(tags, w1b_ref[...],
                    preferred_element_type=jnp.float32)    # + tag branch
    h = jnp.maximum(h + b1_ref[...], 0.0)                  # ReLU
    z = jnp.dot(h.astype(jnp.bfloat16), w2_ref[...],
                preferred_element_type=jnp.float32) + b2_ref[...]
    z_ref[...] = z                                         # (B, H) anchor (idempotent write)

    # ---- decoder: one lane-dense tile of the fused [vocab | recipe] head --
    out_ref[...] = (jnp.dot(z.astype(jnp.bfloat16), wout_ref[...],
                            preferred_element_type=jnp.float32)
                    + bout_ref[...])                       # (B, TILE_N)


@functools.partial(jax.jit, static_argnames=("tile_n",))
def recipe_completion_forward(ingrs, tags, params, *, tile_n=512):
    """ingrs: (B, S) int32 ids; tags: (B, 630) f32 binary tag vector."""
    emb_table = params["embedding"]                        # (V, D) bf16
    B, _ = ingrs.shape
    D = emb_table.shape[1]
    H = params["w2"].shape[1]
    V = params["wv"].shape[1]
    R = params["wr"].shape[1]
    T = tags.shape[1]

    # --- XLA glue: embedding gather + DeepSet sum-pool -> (B, D) -----------
    emb = jnp.take(emb_table, ingrs, axis=0).astype(jnp.float32)   # (B, S, D)
    pooled = jnp.sum(emb, axis=1)                                  # (B, D)

    # --- pad batch to sublane multiple, tag dim to lane multiple -----------
    B_pad = max(8, _round_up(B, 8))
    T_pad = _round_up(T, 128)
    pooled = jnp.pad(pooled, ((0, B_pad - B), (0, 0)))
    tags_p = jnp.pad(tags.astype(jnp.float32),
                     ((0, B_pad - B), (0, T_pad - T)))
    w1b_p = jnp.pad(params["w1b"], ((0, T_pad - T), (0, 0)))

    # --- fuse decoder heads into one lane-dense weight, pad N to tile ------
    w_out = jnp.concatenate([params["wv"], params["wr"]], axis=1)  # (H, V+R) bf16
    b_out = jnp.concatenate([params["bv"], params["br"]], axis=1)  # (1, V+R) f32
    N = V + R
    N_pad = _round_up(N, tile_n)
    w_out = jnp.pad(w_out, ((0, 0), (0, N_pad - N)))
    b_out = jnp.pad(b_out, ((0, 0), (0, N_pad - N)))
    num_tiles = N_pad // tile_n

    const2 = lambda j: (0, 0)        # full-block, resident-in-VMEM operands
    tiled = lambda j: (0, j)         # tiles marching along the fused head

    z, out = pl.pallas_call(
        fused_recipe_kernel,
        out_shape=(jax.ShapeDtypeStruct((B_pad, H), jnp.float32),
                   jax.ShapeDtypeStruct((B_pad, N_pad), jnp.float32)),
        grid=(num_tiles,),
        in_specs=[
            pl.BlockSpec((B_pad, D), const2),        # pooled ingredients
            pl.BlockSpec((B_pad, T_pad), const2),    # tags
            pl.BlockSpec((D, H), const2),            # w1a
            pl.BlockSpec((T_pad, H), const2),        # w1b
            pl.BlockSpec((1, H), const2),            # b1
            pl.BlockSpec((H, H), const2),            # w2
            pl.BlockSpec((1, H), const2),            # b2
            pl.BlockSpec((H, tile_n), tiled),        # fused head weight tile
            pl.BlockSpec((1, tile_n), tiled),        # fused head bias tile
        ],
        out_specs=(pl.BlockSpec((B_pad, H), const2),       # latent / anchor
                   pl.BlockSpec((B_pad, tile_n), tiled)),   # fused logits tile
        compiler_params=pltpu.CompilerParams(
            # Every tile recomputes the (tiny) encoder, so tiles are fully
            # independent -> safe to shard across v7x's two TensorCores.
            dimension_semantics=("parallel",),
            vmem_limit_bytes=64 * 1024 * 1024),
    )(pooled, tags_p, params["w1a"], w1b_p, params["b1"],
      params["w2"], params["b2"], w_out, b_out)

    return {
        "anchor_vectors": z[:B],                    # (B, H) latent
        "vocab_logits": out[:B, :V],                # (B, V) ingredient logits
        "recipe_vectors1": out[:B, V:V + R],        # (B, 600) recipe vector
    }


def init_params(key, vocab_size, embed_dim, n_tags, hidden, recipe_dim):
    """Xavier-normal-style init (ReLU gain); big weights stored in bf16."""
    ks = jax.random.split(key, 6)

    def xavier(k, shape):
        fan_in, fan_out = shape
        std = jnp.sqrt(2.0) * jnp.sqrt(2.0 / (fan_in + fan_out))
        w = std * jax.random.normal(k, shape, dtype=jnp.float32)
        return w.astype(jnp.bfloat16)

    return {
        "embedding": (0.02 * jax.random.normal(
            ks[0], (vocab_size, embed_dim),
            dtype=jnp.float32)).astype(jnp.bfloat16),
        "w1a": xavier(ks[1], (embed_dim, hidden)),
        "w1b": xavier(ks[2], (n_tags, hidden)),
        "b1": jnp.zeros((1, hidden), jnp.float32),
        "w2": xavier(ks[3], (hidden, hidden)),
        "b2": jnp.zeros((1, hidden), jnp.float32),
        "wv": xavier(ks[4], (hidden, vocab_size)),
        "bv": jnp.zeros((1, vocab_size), jnp.float32),
        "wr": xavier(ks[5], (hidden, recipe_dim)),
        "br": jnp.zeros((1, recipe_dim), jnp.float32),
    }


if __name__ == "__main__":
    # Small shapes consistent with the module (vocab scaled down from 30167;
    # tags=630, recipe vec=600, hidden_nodes=32, batch=2, up to 8 ingredients).
    B, S = 2, 8
    VOCAB, EMBED, N_TAGS, HIDDEN, RECIPE_DIM = 512, 32, 630, 32, 600

    key = jax.random.PRNGKey(0)
    k_param, k_ing, k_tag = jax.random.split(key, 3)

    params = init_params(k_param, VOCAB, EMBED, N_TAGS, HIDDEN, RECIPE_DIM)

    ingrs = jax.random.randint(k_ing, (B, S), 0, VOCAB, dtype=jnp.int32)
    tags = (jax.random.uniform(k_tag, (B, N_TAGS)) < 0.05).astype(jnp.float32)

    out = recipe_completion_forward(ingrs, tags, params)
    jax.block_until_ready(out)

    assert out["anchor_vectors"].shape == (B, HIDDEN)
    assert out["vocab_logits"].shape == (B, VOCAB)
    assert out["recipe_vectors1"].shape == (B, RECIPE_DIM)
    assert all(bool(jnp.all(jnp.isfinite(v))) for v in out.values())
    print("KERNEL_OK")
</pallas_src>

<mosaic_0001>
module attributes {stable_mosaic.version = 11 : i64} {
  func.func @fused_recipe_kernel(%arg0: i32, %arg1: memref<8x32xf32, #tpu.memory_space<vmem>>, %arg2: memref<8x640xf32, #tpu.memory_space<vmem>>, %arg3: memref<32x32xbf16, #tpu.memory_space<vmem>>, %arg4: memref<640x32xbf16, #tpu.memory_space<vmem>>, %arg5: memref<1x32xf32, #tpu.memory_space<vmem>>, %arg6: memref<32x32xbf16, #tpu.memory_space<vmem>>, %arg7: memref<1x32xf32, #tpu.memory_space<vmem>>, %arg8: memref<32x512xbf16, #tpu.memory_space<vmem>>, %arg9: memref<1x512xf32, #tpu.memory_space<vmem>>, %arg10: memref<8x32xf32, #tpu.memory_space<vmem>>, %arg11: memref<8x512xf32, #tpu.memory_space<vmem>>) attributes {dimension_semantics = [#tpu.dimension_semantics<parallel>], iteration_bounds = array<i64: 3>, scalar_prefetch = 0 : i64, scratch_operands = 0 : i64, tpu.core_type = #tpu.core_type<tc>, window_params = [{pipeline_mode = #tpu.pipeline_mode<synchronous>, transform_indices = @transform_0, window_bounds = array<i64: 8, 32>}, {pipeline_mode = #tpu.pipeline_mode<synchronous>, transform_indices = @transform_1, window_bounds = array<i64: 8, 640>}, {pipeline_mode = #tpu.pipeline_mode<synchronous>, transform_indices = @transform_2, window_bounds = array<i64: 32, 32>}, {pipeline_mode = #tpu.pipeline_mode<synchronous>, transform_indices = @transform_3, window_bounds = array<i64: 640, 32>}, {pipeline_mode = #tpu.pipeline_mode<synchronous>, transform_indices = @transform_4, window_bounds = array<i64: 1, 32>}, {pipeline_mode = #tpu.pipeline_mode<synchronous>, transform_indices = @transform_5, window_bounds = array<i64: 32, 32>}, {pipeline_mode = #tpu.pipeline_mode<synchronous>, transform_indices = @transform_6, window_bounds = array<i64: 1, 32>}, {transform_indices = @transform_7, window_bounds = array<i64: 32, 512>}, {transform_indices = @transform_8, window_bounds = array<i64: 1, 512>}, {pipeline_mode = #tpu.pipeline_mode<synchronous>, transform_indices = @transform_9, window_bounds = array<i64: 8, 32>}, {transform_indices = @transform_10, window_bounds = array<i64: 8, 512>}]} {
    %c0 = arith.constant 0 : index
    %c0_0 = arith.constant 0 : index
    %0 = vector.load %arg1[%c0, %c0_0] : memref<8x32xf32, #tpu.memory_space<vmem>>, vector<8x32xf32>
    %1 = arith.truncf %0 : vector<8x32xf32> to vector<8x32xbf16>
    %c0_1 = arith.constant 0 : index
    %c0_2 = arith.constant 0 : index
    %2 = vector.load %arg2[%c0_1, %c0_2] : memref<8x640xf32, #tpu.memory_space<vmem>>, vector<8x640xf32>
    %3 = arith.truncf %2 : vector<8x640xf32> to vector<8x640xbf16>
    %c0_3 = arith.constant 0 : index
    %c0_4 = arith.constant 0 : index
    %4 = vector.load %arg3[%c0_3, %c0_4] : memref<32x32xbf16, #tpu.memory_space<vmem>>, vector<32x32xbf16>
    %cst = arith.constant dense<0.000000e+00> : vector<8x32xf32>
    %5 = tpu.matmul %1, %4, %cst {dimension_numbers = #tpu.dot_dimension_numbers<[1], [0], [0], [1], [0, 0, 1, 1], [], []>} : vector<8x32xbf16>, vector<32x32xbf16>, vector<8x32xf32> -> vector<8x32xf32>
    %c0_5 = arith.constant 0 : index
    %c0_6 = arith.constant 0 : index
    %6 = vector.load %arg4[%c0_5, %c0_6] : memref<640x32xbf16, #tpu.memory_space<vmem>>, vector<640x32xbf16>
    %cst_7 = arith.constant dense<0.000000e+00> : vector<8x32xf32>
    %7 = tpu.matmul %3, %6, %cst_7 {dimension_numbers = #tpu.dot_dimension_numbers<[1], [0], [0], [1], [0, 0, 1, 1], [], []>} : vector<8x640xbf16>, vector<640x32xbf16>, vector<8x32xf32> -> vector<8x32xf32>
    %8 = arith.addf %5, %7 : vector<8x32xf32>
    %c0_8 = arith.constant 0 : index
    %c0_9 = arith.constant 0 : index
    %9 = vector.load %arg5[%c0_8, %c0_9] : memref<1x32xf32, #tpu.memory_space<vmem>>, vector<1x32xf32>
    %10 = vector.broadcast %9 : vector<1x32xf32> to vector<8x32xf32>
    %11 = arith.addf %8, %10 : vector<8x32xf32>
    %cst_10 = arith.constant 0.000000e+00 : f32
    %12 = vector.broadcast %cst_10 : f32 to vector<8x32xf32>
    %13 = arith.maximumf %11, %12 : vector<8x32xf32>
    %14 = arith.truncf %13 : vector<8x32xf32> to vector<8x32xbf16>
    %c0_11 = arith.constant 0 : index
    %c0_12 = arith.constant 0 : index
    %15 = vector.load %arg6[%c0_11, %c0_12] : memref<32x32xbf16, #tpu.memory_space<vmem>>, vector<32x32xbf16>
    %cst_13 = arith.constant dense<0.000000e+00> : vector<8x32xf32>
    %16 = tpu.matmul %14, %15, %cst_13 {dimension_numbers = #tpu.dot_dimension_numbers<[1], [0], [0], [1], [0, 0, 1, 1], [], []>} : vector<8x32xbf16>, vector<32x32xbf16>, vector<8x32xf32> -> vector<8x32xf32>
    %c0_14 = arith.constant 0 : index
    %c0_15 = arith.constant 0 : index
    %17 = vector.load %arg7[%c0_14, %c0_15] : memref<1x32xf32, #tpu.memory_space<vmem>>, vector<1x32xf32>
    %18 = vector.broadcast %17 : vector<1x32xf32> to vector<8x32xf32>
    %19 = arith.addf %16, %18 : vector<8x32xf32>
    %c0_16 = arith.constant 0 : index
    %c0_17 = arith.constant 0 : index
    %20 = vector.load %arg10[%c0_16, %c0_17] : memref<8x32xf32, #tpu.memory_space<vmem>>, vector<8x32xf32>
    tpu.vector_store %arg10[%c0_16, %c0_17], %19 {strides = array<i32>} : memref<8x32xf32, #tpu.memory_space<vmem>>, vector<8x32xf32>,
    %21 = arith.truncf %19 : vector<8x32xf32> to vector<8x32xbf16>
    %c0_18 = arith.constant 0 : index
    %c0_19 = arith.constant 0 : index
    %22 = vector.load %arg8[%c0_18, %c0_19] : memref<32x512xbf16, #tpu.memory_space<vmem>>, vector<32x512xbf16>
    %cst_20 = arith.constant dense<0.000000e+00> : vector<8x512xf32>
    %23 = tpu.matmul %21, %22, %cst_20 {dimension_numbers = #tpu.dot_dimension_numbers<[1], [0], [0], [1], [0, 0, 1, 1], [], []>} : vector<8x32xbf16>, vector<32x512xbf16>, vector<8x512xf32> -> vector<8x512xf32>
    %c0_21 = arith.constant 0 : index
    %c0_22 = arith.constant 0 : index
    %24 = vector.load %arg9[%c0_21, %c0_22] : memref<1x512xf32, #tpu.memory_space<vmem>>, vector<1x512xf32>
    %25 = vector.broadcast %24 : vector<1x512xf32> to vector<8x512xf32>
    %26 = arith.addf %23, %25 : vector<8x512xf32>
    %c0_23 = arith.constant 0 : index
    %c0_24 = arith.constant 0 : index
    %27 = vector.load %arg11[%c0_23, %c0_24] : memref<8x512xf32, #tpu.memory_space<vmem>>, vector<8x512xf32>
    tpu.vector_store %arg11[%c0_23, %c0_24], %26 {strides = array<i32>} : memref<8x512xf32, #tpu.memory_space<vmem>>, vector<8x512xf32>,
    return
  }
  func.func @transform_0(%arg0: i32) -> (i32, i32) {
    %c0_i32 = arith.constant 0 : i32
    %c0_i32_0 = arith.constant 0 : i32
    %c0_i32_1 = arith.constant 0 : i32
    return %c0_i32, %c0_i32_0 : i32, i32
  }
  func.func @transform_1(%arg0: i32) -> (i32, i32) {
    %c0_i32 = arith.constant 0 : i32
    %c0_i32_0 = arith.constant 0 : i32
    %c0_i32_1 = arith.constant 0 : i32
    return %c0_i32, %c0_i32_0 : i32, i32
  }
  func.func @transform_2(%arg0: i32) -> (i32, i32) {
    %c0_i32 = arith.constant 0 : i32
    %c0_i32_0 = arith.constant 0 : i32
    %c0_i32_1 = arith.constant 0 : i32
    return %c0_i32, %c0_i32_0 : i32, i32
  }
  func.func @transform_3(%arg0: i32) -> (i32, i32) {
    %c0_i32 = arith.constant 0 : i32
    %c0_i32_0 = arith.constant 0 : i32
    %c0_i32_1 = arith.constant 0 : i32
    return %c0_i32, %c0_i32_0 : i32, i32
  }
  func.func @transform_4(%arg0: i32) -> (i32, i32) {
    %c0_i32 = arith.constant 0 : i32
    %c0_i32_0 = arith.constant 0 : i32
    %c0_i32_1 = arith.constant 0 : i32
    return %c0_i32, %c0_i32_0 : i32, i32
  }
  func.func @transform_5(%arg0: i32) -> (i32, i32) {
    %c0_i32 = arith.constant 0 : i32
    %c0_i32_0 = arith.constant 0 : i32
    %c0_i32_1 = arith.constant 0 : i32
    return %c0_i32, %c0_i32_0 : i32, i32
  }
  func.func @transform_6(%arg0: i32) -> (i32, i32) {
    %c0_i32 = arith.constant 0 : i32
    %c0_i32_0 = arith.constant 0 : i32
    %c0_i32_1 = arith.constant 0 : i32
    return %c0_i32, %c0_i32_0 : i32, i32
  }
  func.func @transform_7(%arg0: i32) -> (i32, i32) {
    %c0_i32 = arith.constant 0 : i32
    %c0_i32_0 = arith.constant 0 : i32
    return %c0_i32, %arg0 : i32, i32
  }
  func.func @transform_8(%arg0: i32) -> (i32, i32) {
    %c0_i32 = arith.constant 0 : i32
    %c0_i32_0 = arith.constant 0 : i32
    return %c0_i32, %arg0 : i32, i32
  }
  func.func @transform_9(%arg0: i32) -> (i32, i32) {
    %c0_i32 = arith.constant 0 : i32
    %c0_i32_0 = arith.constant 0 : i32
    %c0_i32_1 = arith.constant 0 : i32
    return %c0_i32, %c0_i32_0 : i32, i32
  }
  func.func @transform_10(%arg0: i32) -> (i32, i32) {
    %c0_i32 = arith.constant 0 : i32
    %c0_i32_0 = arith.constant 0 : i32
    return %c0_i32, %arg0 : i32, i32
  }
}

</mosaic_0001>

<llo_original>
// kernel: recipe_completion_forward.1
$region0: #{recipe_completion_forward.1}
  #allocation0 [shape = 'u32[]', space=smem, size = 0x4, offset = 0x4, fixed_abs, tag = 'smem constant byte address 0x4 - core index']
  #allocation1 [shape = 'u32[144,128]{1,0:T(1,128)}', space=vmem, size = 0x12000, scoped, tag = 'internal scratch']
  %s0 = inlined_call_operand.hbm [shape: f32[8,32], index: 0, kind: input, shape index: {}]
  %s1 = inlined_call_operand.hbm [shape: f32[8,640], index: 1, kind: input, shape index: {}]
  %s2 = inlined_call_operand.hbm [shape: bf16[32,32], index: 2, kind: input, shape index: {}]
  %s3 = inlined_call_operand.hbm [shape: bf16[640,32], index: 3, kind: input, shape index: {}]
  %s4 = inlined_call_operand.hbm [shape: f32[1,32], index: 4, kind: input, shape index: {}]
  %s5 = inlined_call_operand.hbm [shape: bf16[32,32], index: 5, kind: input, shape index: {}]
  %s6 = inlined_call_operand.hbm [shape: f32[1,32], index: 6, kind: input, shape index: {}]
  %s7 = inlined_call_operand.hbm [shape: bf16[32,1536], index: 7, kind: input, shape index: {}]
  %s8 = inlined_call_operand.hbm [shape: f32[1,1536], index: 8, kind: input, shape index: {}]
  %s9 = inlined_call_operand.hbm [shape: f32[8,32], index: 9, kind: output, shape index: {0}]
  %s10 = inlined_call_operand.hbm [shape: f32[8,1536], index: 10, kind: output, shape index: {1}]
  %11 = xla_tuple %s9, %s10
  %s12 = sld [smem:[#allocation0]]
  $region113: #{recipe_completion_forward.1} parent=0
    _
  %s14 = ssub.s32 1, %s12
  %s15 = scalar_select 0, %s14, %s12
  $region1: #{recipe_completion_forward.1} parent=0
    #allocation2 [shape = 'u8[4096]{0}', space=vmem, size = 0x1000, scoped, tag = 'input window, operand 0, single buffered']
    #allocation3 [shape = 's32[2]{0}', space=sflag, size = 0x8, scoped, tag = 'scoped memory for recipe_completion_forward.1']
    #allocation4 [shape = 's32[2]{0}', space=sflag, size = 0x8, scoped, tag = 'scoped memory for recipe_completion_forward.1']
    #allocation5 [shape = 'u8[20480]{0}', space=vmem, size = 0x5000, scoped, tag = 'input window, operand 1, single buffered']
    #allocation6 [shape = 's32[1]{0}', space=sflag, size = 0x4, scoped, tag = 'scoped memory for recipe_completion_forward.1']
    #allocation7 [shape = 'u8[8192]{0}', space=vmem, size = 0x2000, scoped, tag = 'input window, operand 2, single buffered']
    #allocation8 [shape = 'u8[163840]{0}', space=vmem, size = 0x28000, scoped, tag = 'input window, operand 3, single buffered']
    #allocation9 [shape = 's32[1]{0}', space=sflag, size = 0x4, scoped, tag = 'scoped memory for recipe_completion_forward.1']
    #allocation10 [shape = 'u8[512]{0}', space=vmem, size = 0x400, scoped, tag = 'input window, operand 4, single buffered']
    #allocation11 [shape = 'u8[8192]{0}', space=vmem, size = 0x2000, scoped, tag = 'input window, operand 5, single buffered']
    #allocation12 [shape = 's32[1]{0}', space=sflag, size = 0x4, scoped, tag = 'scoped memory for recipe_completion_forward.1']
    #allocation13 [shape = 'u8[512]{0}', space=vmem, size = 0x400, scoped, tag = 'input window, operand 6, single buffered']
    #allocation14 [shape = 'u8[65536]{0}', space=vmem, size = 0x10000, scoped, tag = 'input window, operand 7']
    #allocation15 [shape = 's32[2]{0}', space=sflag, size = 0x8, scoped, tag = 'scoped memory for recipe_completion_forward.1']
    #allocation16 [shape = 'u8[4096]{0}', space=vmem, size = 0x1000, scoped, tag = 'input window, operand 8']
    #allocation17 [shape = 'u8[4096]{0}', space=vmem, size = 0x1000, scoped, tag = 'output window, operand 0, single buffered']
    #allocation18 [shape = 'u8[32768]{0}', space=vmem, size = 0x8000, scoped, tag = 'output window, operand 1']
    #allocation19 [shape = 's32[2]{0}', space=sflag, size = 0x8, scoped, tag = 'scoped memory for recipe_completion_forward.1']
    %16 = vsyncpa [#allocation3], 0
    %17 = vsyncpa [#allocation6], 0
    %18 = vsyncpa [#allocation9], 0
    %19 = vsyncpa [#allocation12], 0
    %20 = vsyncpa [#allocation15], 0
    %s21 = scalar_lea.sflag [#allocation15], 1
    %22 = vsyncpa %s21, 0
    %23 = vsyncpa [#allocation4], 0
    %24 = vsyncpa [#allocation19], 0
    %s25 = scalar_lea.sflag [#allocation19], 1
    %26 = vsyncpa %s25, 0
    loop: start=0, step=1, limit=5
    $region2: #{recipe_completion_forward.1} parent=1 // loop_pre_header
      _
    $region3: #{recipe_completion_forward.1} parent=1 // loop_header
      %s28 = sphi 0, %s32
      %p29 = scmp.ge.s32.totalorder %s28, 5
      %s36 = sphi 0, %s36
      %s38 = sphi 0, %s36
      %s39 = sphi 0, %s38
      %s53 = sphi 0, %s39
      %s57 = sphi 0, %s57
      %s59 = sphi 0, %s57
      %s60 = sphi 0, %s59
      %s74 = sphi 0, %s60
      %s78 = sphi 0, %s78
      %s80 = sphi 0, %s78
      %s81 = sphi 0, %s80
      %s95 = sphi 0, %s81
      %s99 = sphi 0, %s99
      %s101 = sphi 0, %s99
      %s102 = sphi 0, %s101
      %s116 = sphi 0, %s102
      %s120 = sphi 0, %s120
      %s122 = sphi 0, %s120
      %s123 = sphi 0, %s122
      %s137 = sphi 0, %s123
      %s141 = sphi 0, %s141
      %s143 = sphi 0, %s141
      %s144 = sphi 0, %s143
      %s158 = sphi 0, %s144
      %s162 = sphi 0, %s162
      %s164 = sphi 0, %s162
      %s165 = sphi 0, %s164
      %s179 = sphi 0, %s165
      %s185 = sphi 0, %s187
      %s188 = sphi 0, %s185
      %s189 = sphi 0, %s188
      %s205 = sphi 0, %s189
      %s211 = sphi 0, %s213
      %s214 = sphi 0, %s211
      %s215 = sphi 0, %s214
      %s231 = sphi 0, %s215
      %s235 = sphi 0, %s235
      %s237 = sphi 0, %s235
      %s238 = sphi 0, %s237
      %s252 = sphi 0, %s238
      %s258 = sphi 0, %s260
      %s261 = sphi 0, %s258
      %s262 = sphi 0, %s261
      %s278 = sphi 0, %s262
    $region4: #{recipe_completion_forward.1} parent=1 // loop_header_branch
      %31 = sbr.rel (%p29) target = $region8
    $region5: #{recipe_completion_forward.1} parent=1 // loop_body
      %s33 = ssub.s32 %s28, 1
      %s34 = ssub.s32 %s28, 2
      %s35 = sadd.s32 %s28, 1
      %s37 = sadd.s32 %s36, 1
      %p40 = scmp.eq.s32.totalorder %s28, 2
      %p41 = scmp.ne.s32.totalorder %s36, %s38
      %p42 = scmp.eq.s32.totalorder %s28, 0
      %p43 = por %p41, %p42
      %p44 = scmp.ne.s32.totalorder %s36, %s38
      %p45 = scmp.eq.s32.totalorder %s33, 2
      %p46 = por %p44, %p45
      %p47 = scmp.ne.s32.totalorder %s38, %s39
      %p48 = scmp.eq.s32.totalorder %s33, 0
      %p49 = por %p47, %p48
      %p50 = scmp.ne.s32.totalorder %s38, %s39
      %p51 = scmp.eq.s32.totalorder %s34, 2
      %p52 = por %p50, %p51
      %p54 = scmp.ne.s32.totalorder %s39, %s53
      %p55 = scmp.eq.s32.totalorder %s34, 0
      %p56 = por %p54, %p55
      %s58 = sadd.s32 %s57, 1
      %p61 = scmp.eq.s32.totalorder %s28, 2
      %p62 = scmp.ne.s32.totalorder %s57, %s59
      %p63 = scmp.eq.s32.totalorder %s28, 0
      %p64 = por %p62, %p63
      %p65 = scmp.ne.s32.totalorder %s57, %s59
      %p66 = scmp.eq.s32.totalorder %s33, 2
      %p67 = por %p65, %p66
      %p68 = scmp.ne.s32.totalorder %s59, %s60
      %p69 = scmp.eq.s32.totalorder %s33, 0
      %p70 = por %p68, %p69
      %p71 = scmp.ne.s32.totalorder %s59, %s60
      %p72 = scmp.eq.s32.totalorder %s34, 2
      %p73 = por %p71, %p72
      %p75 = scmp.ne.s32.totalorder %s60, %s74
      %p76 = scmp.eq.s32.totalorder %s34, 0
      %p77 = por %p75, %p76
      %s79 = sadd.s32 %s78, 1
      %p82 = scmp.eq.s32.totalorder %s28, 2
      %p83 = scmp.ne.s32.totalorder %s78, %s80
      %p84 = scmp.eq.s32.totalorder %s28, 0
      %p85 = por %p83, %p84
      %p86 = scmp.ne.s32.totalorder %s78, %s80
      %p87 = scmp.eq.s32.totalorder %s33, 2
      %p88 = por %p86, %p87
      %p89 = scmp.ne.s32.totalorder %s80, %s81
      %p90 = scmp.eq.s32.totalorder %s33, 0
      %p91 = por %p89, %p90
      %p92 = scmp.ne.s32.totalorder %s80, %s81
      %p93 = scmp.eq.s32.totalorder %s34, 2
      %p94 = por %p92, %p93
      %p96 = scmp.ne.s32.totalorder %s81, %s95
      %p97 = scmp.eq.s32.totalorder %s34, 0
      %p98 = por %p96, %p97
      %s100 = sadd.s32 %s99, 1
      %p103 = scmp.eq.s32.totalorder %s28, 2
      %p104 = scmp.ne.s32.totalorder %s99, %s101
      %p105 = scmp.eq.s32.totalorder %s28, 0
      %p106 = por %p104, %p105
      %p107 = scmp.ne.s32.totalorder %s99, %s101
      %p108 = scmp.eq.s32.totalorder %s33, 2
      %p109 = por %p107, %p108
      %p110 = scmp.ne.s32.totalorder %s101, %s102
      %p111 = scmp.eq.s32.totalorder %s33, 0
      %p112 = por %p110, %p111
      %p113 = scmp.ne.s32.totalorder %s101, %s102
      %p114 = scmp.eq.s32.totalorder %s34, 2
      %p115 = por %p113, %p114
      %p117 = scmp.ne.s32.totalorder %s102, %s116
      %p118 = scmp.eq.s32.totalorder %s34, 0
      %p119 = por %p117, %p118
      %s121 = sadd.s32 %s120, 1
      %p124 = scmp.eq.s32.totalorder %s28, 2
      %p125 = scmp.ne.s32.totalorder %s120, %s122
      %p126 = scmp.eq.s32.totalorder %s28, 0
      %p127 = por %p125, %p126
      %p128 = scmp.ne.s32.totalorder %s120, %s122
      %p129 = scmp.eq.s32.totalorder %s33, 2
      %p130 = por %p128, %p129
      %p131 = scmp.ne.s32.totalorder %s122, %s123
      %p132 = scmp.eq.s32.totalorder %s33, 0
      %p133 = por %p131, %p132
      %p134 = scmp.ne.s32.totalorder %s122, %s123
      %p135 = scmp.eq.s32.totalorder %s34, 2
      %p136 = por %p134, %p135
      %p138 = scmp.ne.s32.totalorder %s123, %s137
      %p139 = scmp.eq.s32.totalorder %s34, 0
      %p140 = por %p138, %p139
      %s142 = sadd.s32 %s141, 1
      %p145 = scmp.eq.s32.totalorder %s28, 2
      %p146 = scmp.ne.s32.totalorder %s141, %s143
      %p147 = scmp.eq.s32.totalorder %s28, 0
      %p148 = por %p146, %p147
      %p149 = scmp.ne.s32.totalorder %s141, %s143
      %p150 = scmp.eq.s32.totalorder %s33, 2
      %p151 = por %p149, %p150
      %p152 = scmp.ne.s32.totalorder %s143, %s144
      %p153 = scmp.eq.s32.totalorder %s33, 0
      %p154 = por %p152, %p153
      %p155 = scmp.ne.s32.totalorder %s143, %s144
      %p156 = scmp.eq.s32.totalorder %s34, 2
      %p157 = por %p155, %p156
      %p159 = scmp.ne.s32.totalorder %s144, %s158
      %p160 = scmp.eq.s32.totalorder %s34, 0
      %p161 = por %p159, %p160
      %s163 = sadd.s32 %s162, 1
      %p166 = scmp.eq.s32.totalorder %s28, 2
      %p167 = scmp.ne.s32.totalorder %s162, %s164
      %p168 = scmp.eq.s32.totalorder %s28, 0
      %p169 = por %p167, %p168
      %p170 = scmp.ne.s32.totalorder %s162, %s164
      %p171 = scmp.eq.s32.totalorder %s33, 2
      %p172 = por %p170, %p171
      %p173 = scmp.ne.s32.totalorder %s164, %s165
      %p174 = scmp.eq.s32.totalorder %s33, 0
      %p175 = por %p173, %p174
      %p176 = scmp.ne.s32.totalorder %s164, %s165
      %p177 = scmp.eq.s32.totalorder %s34, 2
      %p178 = por %p176, %p177
      %p180 = scmp.ne.s32.totalorder %s165, %s179
      %p181 = scmp.eq.s32.totalorder %s34, 0
      %p182 = por %p180, %p181
      %s183 = ssub.s32 %s28, %s35
      %p184 = scmp.eq.s32.totalorder %s183, 0
      %s186 = sadd.s32 %s185, 1
      %s187 = scalar_select %p184, %s185, %s186
      %p190 = pneg %p184
      %p191 = scmp.eq.s32.totalorder %s28, 2
      %p192 = por %p190, %p191
      %p193 = scmp.ne.s32.totalorder %s185, %s188
      %p194 = scmp.eq.s32.totalorder %s28, 0
      %p195 = por %p193, %p194
      %p196 = scmp.ne.s32.totalorder %s185, %s188
      %p197 = scmp.eq.s32.totalorder %s33, 2
      %p198 = por %p196, %p197
      %p199 = scmp.ne.s32.totalorder %s188, %s189
      %p200 = scmp.eq.s32.totalorder %s33, 0
      %p201 = por %p199, %p200
      %p202 = scmp.ne.s32.totalorder %s188, %s189
      %p203 = scmp.eq.s32.totalorder %s34, 2
      %p204 = por %p202, %p203
      %p206 = scmp.ne.s32.totalorder %s189, %s205
      %p207 = scmp.eq.s32.totalorder %s34, 0
      %p208 = por %p206, %p207
      %s209 = ssub.s32 %s28, %s35
      %p210 = scmp.eq.s32.totalorder %s209, 0
      %s212 = sadd.s32 %s211, 1
      %s213 = scalar_select %p210, %s211, %s212
      %p216 = pneg %p210
      %p217 = scmp.eq.s32.totalorder %s28, 2
      %p218 = por %p216, %p217
      %p219 = scmp.ne.s32.totalorder %s211, %s214
      %p220 = scmp.eq.s32.totalorder %s28, 0
      %p221 = por %p219, %p220
      %p222 = scmp.ne.s32.totalorder %s211, %s214
      %p223 = scmp.eq.s32.totalorder %s33, 2
      %p224 = por %p222, %p223
      %p225 = scmp.ne.s32.totalorder %s214, %s215
      %p226 = scmp.eq.s32.totalorder %s33, 0
      %p227 = por %p225, %p226
      %p228 = scmp.ne.s32.totalorder %s214, %s215
      %p229 = scmp.eq.s32.totalorder %s34, 2
      %p230 = por %p228, %p229
      %p232 = scmp.ne.s32.totalorder %s215, %s231
      %p233 = scmp.eq.s32.totalorder %s34, 0
      %p234 = por %p232, %p233
      %s236 = sadd.s32 %s235, 1
      %p239 = scmp.eq.s32.totalorder %s28, 2
      %p240 = scmp.ne.s32.totalorder %s235, %s237
      %p241 = scmp.eq.s32.totalorder %s28, 0
      %p242 = por %p240, %p241
      %p243 = scmp.ne.s32.totalorder %s235, %s237
      %p244 = scmp.eq.s32.totalorder %s33, 2
      %p245 = por %p243, %p244
      %p246 = scmp.ne.s32.totalorder %s237, %s238
      %p247 = scmp.eq.s32.totalorder %s33, 0
      %p248 = por %p246, %p247
      %p249 = scmp.ne.s32.totalorder %s237, %s238
      %p250 = scmp.eq.s32.totalorder %s34, 2
      %p251 = por %p249, %p250
      %p253 = scmp.ne.s32.totalorder %s238, %s252
      %p254 = scmp.eq.s32.totalorder %s34, 0
      %p255 = por %p253, %p254
      %s256 = ssub.s32 %s28, %s35
      %p257 = scmp.eq.s32.totalorder %s256, 0
      %s259 = sadd.s32 %s258, 1
      %s260 = scalar_select %p257, %s258, %s259
      %p263 = pneg %p257
      %p264 = scmp.eq.s32.totalorder %s28, 2
      %p265 = por %p263, %p264
      %p266 = scmp.ne.s32.totalorder %s258, %s261
      %p267 = scmp.eq.s32.totalorder %s28, 0
      %p268 = por %p266, %p267
      %p269 = scmp.ne.s32.totalorder %s258, %s261
      %p270 = scmp.eq.s32.totalorder %s33, 2
      %p271 = por %p269, %p270
      %p272 = scmp.ne.s32.totalorder %s261, %s262
      %p273 = scmp.eq.s32.totalorder %s33, 0
      %p274 = por %p272, %p273
      %p275 = scmp.ne.s32.totalorder %s261, %s262
      %p276 = scmp.eq.s32.totalorder %s34, 2
      %p277 = por %p275, %p276
      %p279 = scmp.ne.s32.totalorder %s262, %s278
      %p280 = scmp.eq.s32.totalorder %s34, 0
      %p281 = por %p279, %p280
      %p282 = scmp.le.s32.totalorder 1, %s28
      %p283 = scmp.lt.s32.totalorder %s28, 4
      %p284 = pnand %p282, %p283
      %p285 = pneg %p284
      // Predicated region
      $region9: #{recipe_completion_forward.1} parent=5 // pred_check
        _
      $region10: #{recipe_completion_forward.1} parent=5 // pred_check_branch
        %287 = sbr.rel (%p284) target = $region12
      $region11: #{recipe_completion_forward.1} parent=5 // pred_region
        %s288 = ssub.s32 %s28, 1
        // Predicated region
        $region13: #{recipe_completion_forward.1} parent=11 // pred_check
          %p289 = pneg %p49
        $region14: #{recipe_completion_forward.1} parent=11 // pred_check_branch
          %291 = sbr.rel (%p289) target = $region16
        $region15: #{recipe_completion_forward.1} parent=11 // pred_region
          %s293 = ssub.s32 128, 128
          %294 = vsyncadd [#allocation3], %s293
          %s296 = sshll.u32 [#allocation2], 4
          %s297 = int_to_ptr.vmem [resolvable:$true] %s296
          %299 = dma.hbm_to_vmem [thread:$0]  %s0, 128, %s297, [#allocation3]
        $region16: #{recipe_completion_forward.1} parent=11 // pred_fallthru
          _
        // Predicated region
        $region17: #{recipe_completion_forward.1} parent=11 // pred_check
          %p300 = pneg %p70
        $region18: #{recipe_completion_forward.1} parent=11 // pred_check_branch
          %302 = sbr.rel (%p300) target = $region20
        $region19: #{recipe_completion_forward.1} parent=11 // pred_region
          %s304 = ssub.s32 640, 640
          %305 = vsyncadd [#allocation6], %s304
          %s307 = sshll.u32 [#allocation5], 4
          %s308 = int_to_ptr.vmem [resolvable:$true] %s307
          %310 = dma.hbm_to_vmem [thread:$0]  %s1, 640, %s308, [#allocation6]
        $region20: #{recipe_completion_forward.1} parent=11 // pred_fallthru
          _
        // Predicated region
        $region21: #{recipe_completion_forward.1} parent=11 // pred_check
          %p311 = pneg %p91
        $region22: #{recipe_completion_forward.1} parent=11 // pred_check_branch
          %313 = sbr.rel (%p311) target = $region24
        $region23: #{recipe_completion_forward.1} parent=11 // pred_region
          %s315 = ssub.s32 256, 256
          %316 = vsyncadd [#allocation6], %s315
          %s317 = sshll.u32 [#allocation7], 4
          %s318 = int_to_ptr.vmem [resolvable:$true] %s317
          %323 = dma.hbm_to_vmem [thread:$0]  %s2, 256, %s318, [#allocation6], 64, 64, 4
        $region24: #{recipe_completion_forward.1} parent=11 // pred_fallthru
          _
        // Predicated region
        $region25: #{recipe_completion_forward.1} parent=11 // pred_check
          %p324 = pneg %p112
        $region26: #{recipe_completion_forward.1} parent=11 // pred_check_branch
          %326 = sbr.rel (%p324) target = $region28
        $region27: #{recipe_completion_forward.1} parent=11 // pred_region
          %s328 = ssub.s32 5120, 5120
          %329 = vsyncadd [#allocation9], %s328
          %s330 = sshll.u32 [#allocation8], 4
          %s331 = int_to_ptr.vmem [resolvable:$true] %s330
          %336 = dma.hbm_to_vmem [thread:$0]  %s3, 5120, %s331, [#allocation9], 64, 64, 4
        $region28: #{recipe_completion_forward.1} parent=11 // pred_fallthru
          _
        // Predicated region
        $region29: #{recipe_completion_forward.1} parent=11 // pred_check
          %p337 = pneg %p133
        $region30: #{recipe_completion_forward.1} parent=11 // pred_check_branch
          %339 = sbr.rel (%p337) target = $region32
        $region31: #{recipe_completion_forward.1} parent=11 // pred_region
          %s341 = ssub.s32 16, 16
          %342 = vsyncadd [#allocation9], %s341
          %s344 = sshll.u32 [#allocation10], 4
          %s345 = int_to_ptr.vmem [resolvable:$true] %s344
          %347 = dma.hbm_to_vmem [thread:$0]  %s4, 16, %s345, [#allocation9]
        $region32: #{recipe_completion_forward.1} parent=11 // pred_fallthru
          _
        // Predicated region
        $region33: #{recipe_completion_forward.1} parent=11 // pred_check
          %p348 = pneg %p154
        $region34: #{recipe_completion_forward.1} parent=11 // pred_check_branch
          %350 = sbr.rel (%p348) target = $region36
        $region35: #{recipe_completion_forward.1} parent=11 // pred_region
          %s352 = ssub.s32 256, 256
          %353 = vsyncadd [#allocation12], %s352
          %s354 = sshll.u32 [#allocation11], 4
          %s355 = int_to_ptr.vmem [resolvable:$true] %s354
          %360 = dma.hbm_to_vmem [thread:$0]  %s5, 256, %s355, [#allocation12], 64, 64, 4
        $region36: #{recipe_completion_forward.1} parent=11 // pred_fallthru
          _
        // Predicated region
        $region37: #{recipe_completion_forward.1} parent=11 // pred_check
          %p361 = pneg %p175
        $region38: #{recipe_completion_forward.1} parent=11 // pred_check_branch
          %363 = sbr.rel (%p361) target = $region40
        $region39: #{recipe_completion_forward.1} parent=11 // pred_region
          %s365 = ssub.s32 16, 16
          %366 = vsyncadd [#allocation12], %s365
          %s368 = sshll.u32 [#allocation13], 4
          %s369 = int_to_ptr.vmem [resolvable:$true] %s368
          %371 = dma.hbm_to_vmem [thread:$0]  %s6, 16, %s369, [#allocation12]
        $region40: #{recipe_completion_forward.1} parent=11 // pred_fallthru
          _
      $region12: #{recipe_completion_forward.1} parent=5 // pred_fallthru
        _
      %p372 = scmp.lt.s32.totalorder %s28, 3
      // Predicated region
      $region41: #{recipe_completion_forward.1} parent=5 // pred_check
        %p373 = pneg %p372
      $region42: #{recipe_completion_forward.1} parent=5 // pred_check_branch
        %375 = sbr.rel (%p373) target = $region44
      $region43: #{recipe_completion_forward.1} parent=5 // pred_region
        // Predicated region
        $region45: #{recipe_completion_forward.1} parent=43 // pred_check
          %p376 = pneg %p195
        $region46: #{recipe_completion_forward.1} parent=43 // pred_check_branch
          %378 = sbr.rel (%p376) target = $region48
        $region47: #{recipe_completion_forward.1} parent=43 // pred_region
          %s379 = sand.u32 %s28, 1
          %s380 = scalar_lea.sflag [#allocation15], %s379
          %s381 = sand.u32 %s185, 1
          %s382 = smul.addr %s381, 64
          %s383 = scalar_lea.vmem [#allocation14], %s382
          %s384 = smul.u32 4, %s28
          %s386 = ssub.s32 1024, 1024
          %387 = vsyncadd %s380, %s386
          %s388 = smul.addr %s384, 64
          %s389 = scalar_lea.hbm %s7, %s388
          %s390 = sshll.u32 %s383, 4
          %s391 = int_to_ptr.vmem [resolvable:$true] %s390
          %396 = dma.hbm_to_vmem [thread:$0]  %s389, 1024, %s391, %s380, 768, 256, 16
        $region48: #{recipe_completion_forward.1} parent=43 // pred_fallthru
          _
        // Predicated region
        $region49: #{recipe_completion_forward.1} parent=43 // pred_check
          %p397 = pneg %p221
        $region50: #{recipe_completion_forward.1} parent=43 // pred_check_branch
          %399 = sbr.rel (%p397) target = $region52
        $region51: #{recipe_completion_forward.1} parent=43 // pred_region
          %s400 = sand.u32 %s28, 1
          %s401 = scalar_lea.sflag [#allocation15], %s400
          %s402 = sand.u32 %s211, 1
          %s403 = smul.addr %s402, 4
          %s404 = scalar_lea.vmem [#allocation16], %s403
          %s405 = smul.u32 4, %s28
          %s407 = ssub.s32 64, 64
          %408 = vsyncadd %s401, %s407
          %s409 = smul.addr %s405, 16
          %s410 = scalar_lea.hbm %s8, %s409
          %s412 = sshll.u32 %s404, 4
          %s413 = int_to_ptr.vmem [resolvable:$true] %s412
          %415 = dma.hbm_to_vmem [thread:$0]  %s410, 64, %s413, %s401
        $region52: #{recipe_completion_forward.1} parent=43 // pred_fallthru
          _
      $region44: #{recipe_completion_forward.1} parent=5 // pred_fallthru
        _
      %p416 = scmp.le.s32.totalorder 1, %s28
      %p417 = scmp.lt.s32.totalorder %s28, 4
      %p418 = pnand %p416, %p417
      %p419 = pneg %p418
      // Predicated region
      $region53: #{recipe_completion_forward.1} parent=5 // pred_check
        _
      $region54: #{recipe_completion_forward.1} parent=5 // pred_check_branch
        %421 = sbr.rel (%p418) target = $region56
      $region55: #{recipe_completion_forward.1} parent=5 // pred_region
        %s422 = ssub.s32 %s28, 1
        // Predicated region
        $region57: #{recipe_completion_forward.1} parent=55 // pred_check
          %p423 = pneg %p49
        $region58: #{recipe_completion_forward.1} parent=55 // pred_check_branch
          %425 = sbr.rel (%p423) target = $region60
        $region59: #{recipe_completion_forward.1} parent=55 // pred_region
          %426 = dma.done [#allocation3], 128
        $region60: #{recipe_completion_forward.1} parent=55 // pred_fallthru
          _
        // Predicated region
        $region61: #{recipe_completion_forward.1} parent=55 // pred_check
          %p427 = pneg %p70
        $region62: #{recipe_completion_forward.1} parent=55 // pred_check_branch
          %429 = sbr.rel (%p427) target = $region64
        $region63: #{recipe_completion_forward.1} parent=55 // pred_region
          %430 = dma.done [#allocation6], 640
        $region64: #{recipe_completion_forward.1} parent=55 // pred_fallthru
          _
        // Predicated region
        $region65: #{recipe_completion_forward.1} parent=55 // pred_check
          %p431 = pneg %p91
        $region66: #{recipe_completion_forward.1} parent=55 // pred_check_branch
          %433 = sbr.rel (%p431) target = $region68
        $region67: #{recipe_completion_forward.1} parent=55 // pred_region
          %434 = dma.done [#allocation6], 256
        $region68: #{recipe_completion_forward.1} parent=55 // pred_fallthru
          _
        // Predicated region
        $region69: #{recipe_completion_forward.1} parent=55 // pred_check
          %p435 = pneg %p112
        $region70: #{recipe_completion_forward.1} parent=55 // pred_check_branch
          %437 = sbr.rel (%p435) target = $region72
        $region71: #{recipe_completion_forward.1} parent=55 // pred_region
          %438 = dma.done [#allocation9], 5120
        $region72: #{recipe_completion_forward.1} parent=55 // pred_fallthru
          _
        // Predicated region
        $region73: #{recipe_completion_forward.1} parent=55 // pred_check
          %p439 = pneg %p133
        $region74: #{recipe_completion_forward.1} parent=55 // pred_check_branch
          %441 = sbr.rel (%p439) target = $region76
        $region75: #{recipe_completion_forward.1} parent=55 // pred_region
          %442 = dma.done [#allocation9], 16
        $region76: #{recipe_completion_forward.1} parent=55 // pred_fallthru
          _
        // Predicated region
        $region77: #{recipe_completion_forward.1} parent=55 // pred_check
          %p443 = pneg %p154
        $region78: #{recipe_completion_forward.1} parent=55 // pred_check_branch
          %445 = sbr.rel (%p443) target = $region80
        $region79: #{recipe_completion_forward.1} parent=55 // pred_region
          %446 = dma.done [#allocation12], 256
        $region80: #{recipe_completion_forward.1} parent=55 // pred_fallthru
          _
        // Predicated region
        $region81: #{recipe_completion_forward.1} parent=55 // pred_check
          %p447 = pneg %p175
        $region82: #{recipe_completion_forward.1} parent=55 // pred_check_branch
          %449 = sbr.rel (%p447) target = $region84
        $region83: #{recipe_completion_forward.1} parent=55 // pred_region
          %450 = dma.done [#allocation12], 16
        $region84: #{recipe_completion_forward.1} parent=55 // pred_fallthru
          _
        %s451 = sand.u32 %s33, 1
        %s452 = scalar_lea.sflag [#allocation15], %s451
        %s453 = sand.u32 %s188, 1
        %s454 = smul.addr %s453, 64
        %s455 = scalar_lea.vmem [#allocation14], %s454
        // Predicated region
        $region85: #{recipe_completion_forward.1} parent=55 // pred_check
          %p456 = pneg %p201
        $region86: #{recipe_completion_forward.1} parent=55 // pred_check_branch
          %458 = sbr.rel (%p456) target = $region88
        $region87: #{recipe_completion_forward.1} parent=55 // pred_region
          %459 = dma.done %s452, 1024
        $region88: #{recipe_completion_forward.1} parent=55 // pred_fallthru
          _
        %s460 = sand.u32 %s33, 1
        %s461 = scalar_lea.sflag [#allocation15], %s460
        %s462 = sand.u32 %s214, 1
        %s463 = smul.addr %s462, 4
        %s464 = scalar_lea.vmem [#allocation16], %s463
        // Predicated region
        $region89: #{recipe_completion_forward.1} parent=55 // pred_check
          %p465 = pneg %p227
        $region90: #{recipe_completion_forward.1} parent=55 // pred_check_branch
          %467 = sbr.rel (%p465) target = $region92
        $region91: #{recipe_completion_forward.1} parent=55 // pred_region
          %468 = dma.done %s461, 64
        $region92: #{recipe_completion_forward.1} parent=55 // pred_fallthru
          _
        %p469 = pneg %p49
        %p470 = pneg %p46
        %p471 = pneg %p70
        %p472 = pneg %p67
        %p473 = pneg %p91
        %p474 = pneg %p88
        %p475 = pneg %p112
        %p476 = pneg %p109
        %p477 = pneg %p133
        %p478 = pneg %p130
        %p479 = pneg %p154
        %p480 = pneg %p151
        %p481 = pneg %p175
        %p482 = pneg %p172
        %s483 = sand.u32 %s33, 1
        %s484 = scalar_lea.sflag [#allocation15], %s483
        %s485 = sand.u32 %s188, 1
        %s486 = smul.addr %s485, 64
        %s487 = scalar_lea.vmem [#allocation14], %s486
        %p488 = pneg %p201
        %p489 = pneg %p198
        %s490 = sand.u32 %s33, 1
        %s491 = scalar_lea.sflag [#allocation15], %s490
        %s492 = sand.u32 %s214, 1
        %s493 = smul.addr %s492, 4
        %s494 = scalar_lea.vmem [#allocation16], %s493
        %p495 = pneg %p227
        %p496 = pneg %p224
        %p497 = pneg %p248
        %p498 = pneg %p245
        %p499 = pneg %p274
        %p500 = pneg %p271
        %s501 = sand.u32 %s261, 1
        %s502 = scalar_lea.sflag [#allocation19], %s501
        %s503 = sand.u32 %s261, 1
        %s504 = smul.addr %s503, 32
        %s505 = scalar_lea.vmem [#allocation18], %s504
        %s506 = smul.u32 4, %s33
        %s507 = smul.u32 4, %s33
        %s508 = smul.u32 4, %s33
        %v510 = vld [vmem:[#allocation2] sm:$0xff]
        %v511 = vpack.c.bf16 %v510, %v510
        %v512 = vld [vmem:[#allocation5] sm:$0xff]
        %v513 = vld [vmem:[#allocation5 + $0x8] sm:$0xff]
        %v514 = vld [vmem:[#allocation5 + $0x10] sm:$0xff]
        %v515 = vld [vmem:[#allocation5 + $0x18] sm:$0xff]
        %v516 = vld [vmem:[#allocation5 + $0x20] sm:$0xff]
        %v517 = vpack.c.bf16 %v512, %v512
        %v518 = vpack.c.bf16 %v513, %v513
        %v519 = vpack.c.bf16 %v514, %v514
        %v520 = vpack.c.bf16 %v515, %v515
        %v521 = vpack.c.bf16 %v516, %v516
        %v522 = vld [vmem:[#allocation7] sm:$0xf]
        %v523 = vld [vmem:[#allocation7 + $0x4] sm:$0xf]
        %v524 = vld [vmem:[#allocation7 + $0x8] sm:$0xf]
        %v525 = vld [vmem:[#allocation7 + $0xc] sm:$0xf]
        %v526 = vld [vmem:[#allocation8] sm:$0xf]
        %v527 = vld [vmem:[#allocation8 + $0x4] sm:$0xf]
        %v528 = vld [vmem:[#allocation8 + $0x8] sm:$0xf]
        %v529 = vld [vmem:[#allocation8 + $0xc] sm:$0xf]
        %v530 = vld [vmem:[#allocation8 + $0x10] sm:$0xf]
        %v531 = vld [vmem:[#allocation8 + $0x14] sm:$0xf]
        %v532 = vld [vmem:[#allocation8 + $0x18] sm:$0xf]
        %v533 = vld [vmem:[#allocation8 + $0x1c] sm:$0xf]
        %v534 = vld [vmem:[#allocation8 + $0x20] sm:$0xf]
        %v535 = vld [vmem:[#allocation8 + $0x24] sm:$0xf]
        %v536 = vld [vmem:[#allocation8 + $0x28] sm:$0xf]
        %v537 = vld [vmem:[#allocation8 + $0x2c] sm:$0xf]
        %v538 = vld [vmem:[#allocation8 + $0x30] sm:$0xf]
        %v539 = vld [vmem:[#allocation8 + $0x34] sm:$0xf]
        %v540 = vld [vmem:[#allocation8 + $0x38] sm:$0xf]
        %v541 = vld [vmem:[#allocation8 + $0x3c] sm:$0xf]
        %v542 = vld [vmem:[#allocation8 + $0x40] sm:$0xf]
        %v543 = vld [vmem:[#allocation8 + $0x44] sm:$0xf]
        %v544 = vld [vmem:[#allocation8 + $0x48] sm:$0xf]
        %v545 = vld [vmem:[#allocation8 + $0x4c] sm:$0xf]
        %v546 = vld [vmem:[#allocation8 + $0x50] sm:$0xf]
        %v547 = vld [vmem:[#allocation8 + $0x54] sm:$0xf]
        %v548 = vld [vmem:[#allocation8 + $0x58] sm:$0xf]
        %v549 = vld [vmem:[#allocation8 + $0x5c] sm:$0xf]
        %v550 = vld [vmem:[#allocation8 + $0x60] sm:$0xf]
        %v551 = vld [vmem:[#allocation8 + $0x64] sm:$0xf]
        %v552 = vld [vmem:[#allocation8 + $0x68] sm:$0xf]
        %v553 = vld [vmem:[#allocation8 + $0x6c] sm:$0xf]
        %v554 = vld [vmem:[#allocation8 + $0x70] sm:$0xf]
        %v555 = vld [vmem:[#allocation8 + $0x74] sm:$0xf]
        %v556 = vld [vmem:[#allocation8 + $0x78] sm:$0xf]
        %v557 = vld [vmem:[#allocation8 + $0x7c] sm:$0xf]
        %v558 = vld [vmem:[#allocation8 + $0x80] sm:$0xf]
        %v559 = vld [vmem:[#allocation8 + $0x84] sm:$0xf]
        %v560 = vld [vmem:[#allocation8 + $0x88] sm:$0xf]
        %v561 = vld [vmem:[#allocation8 + $0x8c] sm:$0xf]
        %v562 = vld [vmem:[#allocation8 + $0x90] sm:$0xf]
        %v563 = vld [vmem:[#allocation8 + $0x94] sm:$0xf]
        %v564 = vld [vmem:[#allocation8 + $0x98] sm:$0xf]
        %v565 = vld [vmem:[#allocation8 + $0x9c] sm:$0xf]
        %v566 = vld [vmem:[#allocation8 + $0xa0] sm:$0xf]
        %v567 = vld [vmem:[#allocation8 + $0xa4] sm:$0xf]
        %v568 = vld [vmem:[#allocation8 + $0xa8] sm:$0xf]
        %v569 = vld [vmem:[#allocation8 + $0xac] sm:$0xf]
        %v570 = vld [vmem:[#allocation8 + $0xb0] sm:$0xf]
        %v571 = vld [vmem:[#allocation8 + $0xb4] sm:$0xf]
        %v572 = vld [vmem:[#allocation8 + $0xb8] sm:$0xf]
        %v573 = vld [vmem:[#allocation8 + $0xbc] sm:$0xf]
        %v574 = vld [vmem:[#allocation8 + $0xc0] sm:$0xf]
        %v575 = vld [vmem:[#allocation8 + $0xc4] sm:$0xf]
        %v576 = vld [vmem:[#allocation8 + $0xc8] sm:$0xf]
        %v577 = vld [vmem:[#allocation8 + $0xcc] sm:$0xf]
        %v578 = vld [vmem:[#allocation8 + $0xd0] sm:$0xf]
        %v579 = vld [vmem:[#allocation8 + $0xd4] sm:$0xf]
        %v580 = vld [vmem:[#allocation8 + $0xd8] sm:$0xf]
        %v581 = vld [vmem:[#allocation8 + $0xdc] sm:$0xf]
        %v582 = vld [vmem:[#allocation8 + $0xe0] sm:$0xf]
        %v583 = vld [vmem:[#allocation8 + $0xe4] sm:$0xf]
        %v584 = vld [vmem:[#allocation8 + $0xe8] sm:$0xf]
        %v585 = vld [vmem:[#allocation8 + $0xec] sm:$0xf]
        %v586 = vld [vmem:[#allocation8 + $0xf0] sm:$0xf]
        %v587 = vld [vmem:[#allocation8 + $0xf4] sm:$0xf]
        %v588 = vld [vmem:[#allocation8 + $0xf8] sm:$0xf]
        %v589 = vld [vmem:[#allocation8 + $0xfc] sm:$0xf]
        %v590 = vld [vmem:[#allocation8 + $0x100] sm:$0xf]
        %v591 = vld [vmem:[#allocation8 + $0x104] sm:$0xf]
        %v592 = vld [vmem:[#allocation8 + $0x108] sm:$0xf]
        %v593 = vld [vmem:[#allocation8 + $0x10c] sm:$0xf]
        %v594 = vld [vmem:[#allocation8 + $0x110] sm:$0xf]
        %v595 = vld [vmem:[#allocation8 + $0x114] sm:$0xf]
        %v596 = vld [vmem:[#allocation8 + $0x118] sm:$0xf]
        %v597 = vld [vmem:[#allocation8 + $0x11c] sm:$0xf]
        %v598 = vld [vmem:[#allocation8 + $0x120] sm:$0xf]
        %v599 = vld [vmem:[#allocation8 + $0x124] sm:$0xf]
        %v600 = vld [vmem:[#allocation8 + $0x128] sm:$0xf]
        %v601 = vld [vmem:[#allocation8 + $0x12c] sm:$0xf]
        %v602 = vld [vmem:[#allocation8 + $0x130] sm:$0xf]
        %v603 = vld [vmem:[#allocation8 + $0x134] sm:$0xf]
        %v604 = vld [vmem:[#allocation8 + $0x138] sm:$0xf]
        %v605 = vld [vmem:[#allocation8 + $0x13c] sm:$0xf]
        %v686 = vunpack.c.l.b16 %v526
        %v687 = vunpack.c.l.b16 %v527
        %v688 = vunpack.c.l.b16 %v528
        %v689 = vunpack.c.l.b16 %v529
        %v690 = vunpack.c.l.b16 %v530
        %v691 = vunpack.c.l.b16 %v531
        %v692 = vunpack.c.l.b16 %v532
        %v693 = vunpack.c.l.b16 %v533
        %v694 = vunpack.c.l.b16 %v534
        %v695 = vunpack.c.l.b16 %v535
        %v696 = vunpack.c.l.b16 %v536
        %v697 = vunpack.c.l.b16 %v537
        %v698 = vunpack.c.l.b16 %v538
        %v699 = vunpack.c.l.b16 %v539
        %v700 = vunpack.c.l.b16 %v540
        %v701 = vunpack.c.l.b16 %v541
        %v702 = vunpack.c.l.b16 %v542
        %v703 = vunpack.c.l.b16 %v543
        %v704 = vunpack.c.l.b16 %v544
        %v705 = vunpack.c.l.b16 %v545
        %v706 = vunpack.c.l.b16 %v546
        %v707 = vunpack.c.l.b16 %v547
        %v708 = vunpack.c.l.b16 %v548
        %v709 = vunpack.c.l.b16 %v549
        %v710 = vunpack.c.l.b16 %v550
        %v711 = vunpack.c.l.b16 %v551
        %v712 = vunpack.c.l.b16 %v552
        %v713 = vunpack.c.l.b16 %v553
        %v714 = vunpack.c.l.b16 %v554
        %v715 = vunpack.c.l.b16 %v555
        %v716 = vunpack.c.l.b16 %v556
        %v717 = vunpack.c.l.b16 %v557
        %v718 = vunpack.c.l.b16 %v558
        %v719 = vunpack.c.l.b16 %v559
        %v720 = vunpack.c.l.b16 %v560
        %v721 = vunpack.c.l.b16 %v561
        %v722 = vunpack.c.l.b16 %v562
        %v723 = vunpack.c.l.b16 %v563
        %v724 = vunpack.c.l.b16 %v564
        %v725 = vunpack.c.l.b16 %v565
        %v726 = vunpack.c.l.b16 %v566
        %v727 = vunpack.c.l.b16 %v567
        %v728 = vunpack.c.l.b16 %v568
        %v729 = vunpack.c.l.b16 %v569
        %v730 = vunpack.c.l.b16 %v570
        %v731 = vunpack.c.l.b16 %v571
        %v732 = vunpack.c.l.b16 %v572
        %v733 = vunpack.c.l.b16 %v573
        %v734 = vunpack.c.l.b16 %v574
        %v735 = vunpack.c.l.b16 %v575
        %v736 = vunpack.c.l.b16 %v576
        %v737 = vunpack.c.l.b16 %v577
        %v738 = vunpack.c.l.b16 %v578
        %v739 = vunpack.c.l.b16 %v579
        %v740 = vunpack.c.l.b16 %v580
        %v741 = vunpack.c.l.b16 %v581
        %v742 = vunpack.c.l.b16 %v582
        %v743 = vunpack.c.l.b16 %v583
        %v744 = vunpack.c.l.b16 %v584
        %v745 = vunpack.c.l.b16 %v585
        %v746 = vunpack.c.l.b16 %v586
        %v747 = vunpack.c.l.b16 %v587
        %v748 = vunpack.c.l.b16 %v588
        %v749 = vunpack.c.l.b16 %v589
        %v750 = vunpack.c.l.b16 %v590
        %v751 = vunpack.c.l.b16 %v591
        %v752 = vunpack.c.l.b16 %v592
        %v753 = vunpack.c.l.b16 %v593
        %v754 = vunpack.c.l.b16 %v594
        %v755 = vunpack.c.l.b16 %v595
        %v756 = vunpack.c.l.b16 %v596
        %v757 = vunpack.c.l.b16 %v597
        %v758 = vunpack.c.l.b16 %v598
        %v759 = vunpack.c.l.b16 %v599
        %v760 = vunpack.c.l.b16 %v600
        %v761 = vunpack.c.l.b16 %v601
        %v762 = vunpack.c.l.b16 %v602
        %v763 = vunpack.c.l.b16 %v603
        %v764 = vunpack.c.l.b16 %v604
        %v765 = vunpack.c.l.b16 %v605
        %v766 = vpack.c.b16 %v687, %v686
        %v767 = vpack.c.b16 %v689, %v688
        %v768 = vpack.c.b16 %v691, %v690
        %v769 = vpack.c.b16 %v693, %v692
        %v770 = vpack.c.b16 %v695, %v694
        %v771 = vpack.c.b16 %v697, %v696
        %v772 = vpack.c.b16 %v699, %v698
        %v773 = vpack.c.b16 %v701, %v700
        %v774 = vpack.c.b16 %v703, %v702
        %v775 = vpack.c.b16 %v705, %v704
        %v776 = vpack.c.b16 %v707, %v706
        %v777 = vpack.c.b16 %v709, %v708
        %v778 = vpack.c.b16 %v711, %v710
        %v779 = vpack.c.b16 %v713, %v712
        %v780 = vpack.c.b16 %v715, %v714
        %v781 = vpack.c.b16 %v717, %v716
        %v782 = vpack.c.b16 %v719, %v718
        %v783 = vpack.c.b16 %v721, %v720
        %v784 = vpack.c.b16 %v723, %v722
        %v785 = vpack.c.b16 %v725, %v724
        %v786 = vpack.c.b16 %v727, %v726
        %v787 = vpack.c.b16 %v729, %v728
        %v788 = vpack.c.b16 %v731, %v730
        %v789 = vpack.c.b16 %v733, %v732
        %v790 = vpack.c.b16 %v735, %v734
        %v791 = vpack.c.b16 %v737, %v736
        %v792 = vpack.c.b16 %v739, %v738
        %v793 = vpack.c.b16 %v741, %v740
        %v794 = vpack.c.b16 %v743, %v742
        %v795 = vpack.c.b16 %v745, %v744
        %v796 = vpack.c.b16 %v747, %v746
        %v797 = vpack.c.b16 %v749, %v748
        %v798 = vpack.c.b16 %v751, %v750
        %v799 = vpack.c.b16 %v753, %v752
        %v800 = vpack.c.b16 %v755, %v754
        %v801 = vpack.c.b16 %v757, %v756
        %v802 = vpack.c.b16 %v759, %v758
        %v803 = vpack.c.b16 %v761, %v760
        %v804 = vpack.c.b16 %v763, %v762
        %v805 = vpack.c.b16 %v765, %v764
        %846 = vmatprep.subr.bf16.mxu0 0
        %847 = vmatpush1.bf16.msra.mxu0 %v766
        %848 = vmatprep.subr.bf16.mxu0 0
        %849 = vmatpush1.bf16.msra.mxu0 %v767
        %850 = vmatprep.subr.bf16.mxu0 0
        %851 = vmatpush1.bf16.msra.mxu0 %v768
        %852 = vmatprep.subr.bf16.mxu0 0
        %853 = vmatpush1.bf16.msra.mxu0 %v769
        %854 = vmatprep.subr.bf16.mxu0 0
        %855 = vmatpush1.bf16.msra.mxu0 %v770
        %856 = vmatprep.subr.bf16.mxu0 0
        %857 = vmatpush1.bf16.msra.mxu0 %v771
        %858 = vmatprep.subr.bf16.mxu0 0
        %859 = vmatpush1.bf16.msra.mxu0 %v772
        %860 = vmatprep.subr.bf16.mxu0 0
        %861 = vmatpush1.bf16.msra.mxu0 %v773
        %862 = vmatprep.subr.bf16.mxu0 0
        %863 = vmatpush1.bf16.msra.mxu0 %v774
        %864 = vmatprep.subr.bf16.mxu0 0
        %865 = vmatpush1.bf16.msra.mxu0 %v775
        %866 = vmatprep.subr.bf16.mxu0 0
        %867 = vmatpush1.bf16.msra.mxu0 %v776
        %868 = vmatprep.subr.bf16.mxu0 0
        %869 = vmatpush1.bf16.msra.mxu0 %v777
        %870 = vmatprep.subr.bf16.mxu0 0
        %871 = vmatpush1.bf16.msra.mxu0 %v778
        %872 = vmatprep.subr.bf16.mxu0 0
        %873 = vmatpush1.bf16.msra.mxu0 %v779
        %874 = vmatprep.subr.bf16.mxu0 0
        %875 = vmatpush1.bf16.msra.mxu0 %v780
        %876 = vmatprep.subr.bf16.mxu0 0
        %877 = vmatpush1.bf16.msra.mxu0 %v781
        %878 = vmatprep.mubr.bf16.mxu0 %v518
        %879 = vmatmul.mubr.bf16.gmra.mrb[0].mxu0 %v517
        %v880 = vpop.f32.mrb[0].mxu0
        %v881 = vadd.f32 0.0, %v880
        %v882 = vpop.f32.mrb[0].mxu0
        %v883 = vpop.f32.mrb[0].mxu0
        %v884 = vpop.f32.mrb[0].mxu0
        %885 = vdwg.mxu0
        %886 = vmatprep.subr.bf16.mxu0 0
        %887 = vmatpush1.bf16.msra.mxu0 %v782
        %888 = vmatprep.subr.bf16.mxu0 0
        %889 = vmatpush1.bf16.msra.mxu0 %v783
        %890 = vmatprep.subr.bf16.mxu0 0
        %891 = vmatpush1.bf16.msra.mxu0 %v784
        %892 = vmatprep.subr.bf16.mxu0 0
        %893 = vmatpush1.bf16.msra.mxu0 %v785
        %894 = vmatprep.subr.bf16.mxu0 0
        %895 = vmatpush1.bf16.msra.mxu0 %v786
        %896 = vmatprep.subr.bf16.mxu0 0
        %897 = vmatpush1.bf16.msra.mxu0 %v787
        %898 = vmatprep.subr.bf16.mxu0 0
        %899 = vmatpush1.bf16.msra.mxu0 %v788
        %900 = vmatprep.subr.bf16.mxu0 0
        %901 = vmatpush1.bf16.msra.mxu0 %v789
        %902 = vmatprep.subr.bf16.mxu0 0
        %903 = vmatpush1.bf16.msra.mxu0 %v790
        %904 = vmatprep.subr.bf16.mxu0 0
        %905 = vmatpush1.bf16.msra.mxu0 %v791
        %906 = vmatprep.subr.bf16.mxu0 0
        %907 = vmatpush1.bf16.msra.mxu0 %v792
        %908 = vmatprep.subr.bf16.mxu0 0
        %909 = vmatpush1.bf16.msra.mxu0 %v793
        %910 = vmatprep.subr.bf16.mxu0 0
        %911 = vmatpush1.bf16.msra.mxu0 %v794
        %912 = vmatprep.subr.bf16.mxu0 0
        %913 = vmatpush1.bf16.msra.mxu0 %v795
        %914 = vmatprep.subr.bf16.mxu0 0
        %915 = vmatpush1.bf16.msra.mxu0 %v796
        %916 = vmatprep.subr.bf16.mxu0 0
        %917 = vmatpush1.bf16.msra.mxu0 %v797
        %918 = vmatprep.mubr.bf16.mxu0 %v520
        %919 = vmatmul.mubr.bf16.gmra.mrb[0].mxu0 %v519
        %v920 = vpop.f32.mrb[0].mxu0
        %v921 = vadd.f32 %v881, %v920
        %v922 = vpop.f32.mrb[0].mxu0
        %v923 = vpop.f32.mrb[0].mxu0
        %v924 = vpop.f32.mrb[0].mxu0
        %925 = vdwg.mxu0
        %926 = vmatprep.subr.bf16.mxu0 0
        %927 = vmatpush1.bf16.msra.mxu0 %v798
        %928 = vmatprep.subr.bf16.mxu0 0
        %929 = vmatpush1.bf16.msra.mxu0 %v799
        %930 = vmatprep.subr.bf16.mxu0 0
        %931 = vmatpush1.bf16.msra.mxu0 %v800
        %932 = vmatprep.subr.bf16.mxu0 0
        %933 = vmatpush1.bf16.msra.mxu0 %v801
        %934 = vmatprep.subr.bf16.mxu0 0
        %935 = vmatpush1.bf16.msra.mxu0 %v802
        %936 = vmatprep.subr.bf16.mxu0 0
        %937 = vmatpush1.bf16.msra.mxu0 %v803
        %938 = vmatprep.subr.bf16.mxu0 0
        %939 = vmatpush1.bf16.msra.mxu0 %v804
        %940 = vmatprep.subr.bf16.mxu0 0
        %941 = vmatpush1.bf16.msra.mxu0 %v805
        %942 = vmatprep.subr.bf16.mxu0 0
        %943 = vmatpush1.bf16.msra.mxu0 0
        %944 = vmatprep.subr.bf16.mxu0 0
        %945 = vmatpush1.bf16.msra.mxu0 0
        %946 = vmatprep.subr.bf16.mxu0 0
        %947 = vmatpush1.bf16.msra.mxu0 0
        %948 = vmatprep.subr.bf16.mxu0 0
        %949 = vmatpush1.bf16.msra.mxu0 0
        %950 = vmatprep.subr.bf16.mxu0 0
        %951 = vmatpush1.bf16.msra.mxu0 0
        %952 = vmatprep.subr.bf16.mxu0 0
        %953 = vmatpush1.bf16.msra.mxu0 0
        %954 = vmatprep.subr.bf16.mxu0 0
        %955 = vmatpush1.bf16.msra.mxu0 0
        %956 = vmatprep.subr.bf16.mxu0 0
        %957 = vmatpush1.bf16.msra.mxu0 0
        %958 = vmatprep.mubr.bf16.mxu0 0
        %959 = vmatmul.mubr.bf16.gmra.mrb[0].mxu0 %v521
        %v960 = vpop.f32.mrb[0].mxu0
        %v961 = vadd.f32 %v921, %v960
        %v962 = vpop.f32.mrb[0].mxu0
        %v963 = vpop.f32.mrb[0].mxu0
        %v964 = vpop.f32.mrb[0].mxu0
        %965 = vdwg.mxu0
        %v970 = vunpack.c.l.b16 %v522
        %v971 = vunpack.c.l.b16 %v523
        %v972 = vunpack.c.l.b16 %v524
        %v973 = vunpack.c.l.b16 %v525
        %v974 = vpack.c.b16 %v971, %v970
        %v975 = vpack.c.b16 %v973, %v972
        %vm978 = vcmask 261120
        %v980 = vsel %vm978, %v511, 0
        %982 = vmatprep.subr.bf16.mxu0 0
        %983 = vmatpush1.bf16.msra.mxu0 %v974
        %984 = vmatprep.subr.bf16.mxu0 0
        %985 = vmatpush1.bf16.msra.mxu0 %v975
        %986 = vmatprep.subr.bf16.mxu0 0
        %987 = vmatpush1.bf16.msra.mxu0 0
        %988 = vmatprep.subr.bf16.mxu0 0
        %989 = vmatpush1.bf16.msra.mxu0 0
        %990 = vmatprep.subr.bf16.mxu0 0
        %991 = vmatpush1.bf16.msra.mxu0 0
        %992 = vmatprep.subr.bf16.mxu0 0
        %993 = vmatpush1.bf16.msra.mxu0 0
        %994 = vmatprep.subr.bf16.mxu0 0
        %995 = vmatpush1.bf16.msra.mxu0 0
        %996 = vmatprep.subr.bf16.mxu0 0
        %997 = vmatpush1.bf16.msra.mxu0 0
        %998 = vmatprep.subr.bf16.mxu0 0
        %999 = vmatpush1.bf16.msra.mxu0 0
        %1000 = vmatprep.subr.bf16.mxu0 0
        %1001 = vmatpush1.bf16.msra.mxu0 0
        %1002 = vmatprep.subr.bf16.mxu0 0
        %1003 = vmatpush1.bf16.msra.mxu0 0
        %1004 = vmatprep.subr.bf16.mxu0 0
        %1005 = vmatpush1.bf16.msra.mxu0 0
        %1006 = vmatprep.subr.bf16.mxu0 0
        %1007 = vmatpush1.bf16.msra.mxu0 0
        %1008 = vmatprep.subr.bf16.mxu0 0
        %1009 = vmatpush1.bf16.msra.mxu0 0
        %1010 = vmatprep.subr.bf16.mxu0 0
        %1011 = vmatpush1.bf16.msra.mxu0 0
        %1012 = vmatprep.subr.bf16.mxu0 0
        %1013 = vmatpush1.bf16.msra.mxu0 0
        %1014 = vmatprep.mubr.bf16.mxu0 0
        %1015 = vmatmul.mubr.bf16.gmra.mrb[0].mxu0 %v980
        %v1016 = vpop.f32.mrb[0].mxu0
        %v1017 = vadd.f32 %v961, %v1016
        %v1018 = vpop.f32.mrb[0].mxu0
        %v1019 = vpop.f32.mrb[0].mxu0
        %v1020 = vpop.f32.mrb[0].mxu0
        %1021 = vdwg.mxu0
        %v1022 = vld [vmem:[#allocation10] sm:$0x1]
        %v1024 = vlaneseq
        %v1025 = vshrl.u32 %v1024, 7
        %v1026 = vsub.s32 0, %v1025
        %v1027 = vrot.slane %v1022, %v1026
        %v1029 = vadd.f32 %v1017, %v1027
        %v1030 = vmax.f32 %v1029, 0.0
        %v1031 = vpack.c.bf16 %v1030, %v1030
        %v1032 = vld [vmem:[#allocation11] sm:$0xf]
        %v1033 = vld [vmem:[#allocation11 + $0x4] sm:$0xf]
        %v1034 = vld [vmem:[#allocation11 + $0x8] sm:$0xf]
        %v1035 = vld [vmem:[#allocation11 + $0xc] sm:$0xf]
        %v1036 = vld [vmem:[#allocation13] sm:$0x1]
        %v1038 = vlaneseq
        %v1039 = vshrl.u32 %v1038, 7
        %v1040 = vsub.s32 0, %v1039
        %v1041 = vrot.slane %v1036, %v1040
        %v1047 = vunpack.c.l.b16 %v1032
        %v1048 = vunpack.c.l.b16 %v1033
        %v1049 = vunpack.c.l.b16 %v1034
        %v1050 = vunpack.c.l.b16 %v1035
        %v1051 = vpack.c.b16 %v1048, %v1047
        %v1052 = vpack.c.b16 %v1050, %v1049
        %v1056 = vsel %vm978, %v1031, 0
        %1058 = vmatprep.subr.bf16.mxu0 0
        %1059 = vmatpush1.bf16.msra.mxu0 %v1051
        %1060 = vmatprep.subr.bf16.mxu0 0
        %1061 = vmatpush1.bf16.msra.mxu0 %v1052
        %1062 = vmatprep.subr.bf16.mxu0 0
        %1063 = vmatpush1.bf16.msra.mxu0 0
        %1064 = vmatprep.subr.bf16.mxu0 0
        %1065 = vmatpush1.bf16.msra.mxu0 0
        %1066 = vmatprep.subr.bf16.mxu0 0
        %1067 = vmatpush1.bf16.msra.mxu0 0
        %1068 = vmatprep.subr.bf16.mxu0 0
        %1069 = vmatpush1.bf16.msra.mxu0 0
        %1070 = vmatprep.subr.bf16.mxu0 0
        %1071 = vmatpush1.bf16.msra.mxu0 0
        %1072 = vmatprep.subr.bf16.mxu0 0
        %1073 = vmatpush1.bf16.msra.mxu0 0
        %1074 = vmatprep.subr.bf16.mxu0 0
        %1075 = vmatpush1.bf16.msra.mxu0 0
        %1076 = vmatprep.subr.bf16.mxu0 0
        %1077 = vmatpush1.bf16.msra.mxu0 0
        %1078 = vmatprep.subr.bf16.mxu0 0
        %1079 = vmatpush1.bf16.msra.mxu0 0
        %1080 = vmatprep.subr.bf16.mxu0 0
        %1081 = vmatpush1.bf16.msra.mxu0 0
        %1082 = vmatprep.subr.bf16.mxu0 0
        %1083 = vmatpush1.bf16.msra.mxu0 0
        %1084 = vmatprep.subr.bf16.mxu0 0
        %1085 = vmatpush1.bf16.msra.mxu0 0
        %1086 = vmatprep.subr.bf16.mxu0 0
        %1087 = vmatpush1.bf16.msra.mxu0 0
        %1088 = vmatprep.subr.bf16.mxu0 0
        %1089 = vmatpush1.bf16.msra.mxu0 0
        %1090 = vmatprep.mubr.bf16.mxu0 0
        %1091 = vmatmul.mubr.bf16.gmra.mrb[0].mxu0 %v1056
        %v1092 = vpop.f32.mrb[0].mxu0
        %v1093 = vadd.f32 %v1041, %v1092
        %v1094 = vpop.f32.mrb[0].mxu0
        %v1095 = vpop.f32.mrb[0].mxu0
        %v1096 = vpop.f32.mrb[0].mxu0
        %1097 = vdwg.mxu0
        %1098 = vst.msk [vmem:[#allocation17] sm:$0xff] %vm978, %v1093
        %v1099 = vpack.c.bf16 %v1093, %v1093
        %v1100 = vld [vmem:[%s455] sm:$0xff]
        %v1101 = vld [vmem:[%s455 + $0x8] sm:$0xff]
        %v1102 = vld [vmem:[%s455 + $0x10] sm:$0xff]
        %v1103 = vld [vmem:[%s455 + $0x18] sm:$0xff]
        %v1104 = vld [vmem:[%s455 + $0x20] sm:$0xff]
        %v1105 = vld [vmem:[%s455 + $0x28] sm:$0xff]
        %v1106 = vld [vmem:[%s455 + $0x30] sm:$0xff]
        %v1107 = vld [vmem:[%s455 + $0x38] sm:$0xff]
        %v1108 = vld [vmem:[%s464] sm:$0xf]
        %v1110 = vlaneseq
        %v1111 = vshrl.u32 %v1110, 7
        %v1112 = vsub.s32 0, %v1111
        %v1113 = vrot.slane %v1108, %v1112
        %v1114 = vlaneseq
        %v1115 = vshrl.u32 %v1114, 7
        %v1116 = vsub.s32 1, %v1115
        %v1117 = vrot.slane %v1108, %v1116
        %v1118 = vlaneseq
        %v1119 = vshrl.u32 %v1118, 7
        %v1120 = vsub.s32 2, %v1119
        %v1121 = vrot.slane %v1108, %v1120
        %v1122 = vlaneseq
        %v1123 = vshrl.u32 %v1122, 7
        %v1124 = vsub.s32 3, %v1123
        %v1125 = vrot.slane %v1108, %v1124
        %v1138 = vunpack.c.l.b16 %v1100
        %v1139 = vunpack.c.h.b16 %v1100
        %v1140 = vunpack.c.l.b16 %v1101
        %v1141 = vunpack.c.h.b16 %v1101
        %v1142 = vunpack.c.l.b16 %v1102
        %v1143 = vunpack.c.h.b16 %v1102
        %v1144 = vunpack.c.l.b16 %v1103
        %v1145 = vunpack.c.h.b16 %v1103
        %v1146 = vunpack.c.l.b16 %v1104
        %v1147 = vunpack.c.h.b16 %v1104
        %v1148 = vunpack.c.l.b16 %v1105
        %v1149 = vunpack.c.h.b16 %v1105
        %v1150 = vunpack.c.l.b16 %v1106
        %v1151 = vunpack.c.h.b16 %v1106
        %v1152 = vunpack.c.l.b16 %v1107
        %v1153 = vunpack.c.h.b16 %v1107
        %v1154 = vpack.c.b16 %v1142, %v1138
        %v1155 = vpack.c.b16 %v1143, %v1139
        %v1156 = vpack.c.b16 %v1144, %v1140
        %v1157 = vpack.c.b16 %v1145, %v1141
        %v1158 = vpack.c.b16 %v1150, %v1146
        %v1159 = vpack.c.b16 %v1151, %v1147
        %v1160 = vpack.c.b16 %v1152, %v1148
        %v1161 = vpack.c.b16 %v1153, %v1149
        %v1171 = vsel %vm978, %v1099, 0
        %1173 = vmatprep.subr.bf16.mxu0 %v1155
        %1174 = vmatpush1.bf16.msra.mxu0 %v1154
        %1175 = vmatprep.subr.bf16.mxu0 %v1159
        %1176 = vmatpush1.bf16.msra.mxu0 %v1158
        %1177 = vmatprep.subr.bf16.mxu0 0
        %1178 = vmatpush1.bf16.msra.mxu0 0
        %1179 = vmatprep.subr.bf16.mxu0 0
        %1180 = vmatpush1.bf16.msra.mxu0 0
        %1181 = vmatprep.subr.bf16.mxu0 0
        %1182 = vmatpush1.bf16.msra.mxu0 0
        %1183 = vmatprep.subr.bf16.mxu0 0
        %1184 = vmatpush1.bf16.msra.mxu0 0
        %1185 = vmatprep.subr.bf16.mxu0 0
        %1186 = vmatpush1.bf16.msra.mxu0 0
        %1187 = vmatprep.subr.bf16.mxu0 0
        %1188 = vmatpush1.bf16.msra.mxu0 0
        %1189 = vmatprep.subr.bf16.mxu0 0
        %1190 = vmatpush1.bf16.msra.mxu0 0
        %1191 = vmatprep.subr.bf16.mxu0 0
        %1192 = vmatpush1.bf16.msra.mxu0 0
        %1193 = vmatprep.subr.bf16.mxu0 0
        %1194 = vmatpush1.bf16.msra.mxu0 0
        %1195 = vmatprep.subr.bf16.mxu0 0
        %1196 = vmatpush1.bf16.msra.mxu0 0
        %1197 = vmatprep.subr.bf16.mxu0 0
        %1198 = vmatpush1.bf16.msra.mxu0 0
        %1199 = vmatprep.subr.bf16.mxu0 0
        %1200 = vmatpush1.bf16.msra.mxu0 0
        %1201 = vmatprep.subr.bf16.mxu0 0
        %1202 = vmatpush1.bf16.msra.mxu0 0
        %1203 = vmatprep.subr.bf16.mxu0 0
        %1204 = vmatpush1.bf16.msra.mxu0 0
        %1205 = vmatprep.mubr.bf16.mxu0 0
        %1206 = vmatmul.mubr.bf16.gmra.mrb[0].mxu0 %v1171
        %v1207 = vpop.f32.mrb[0].mxu0
        %v1208 = vadd.f32 %v1113, %v1207
        %v1209 = vpop.f32.mrb[0].mxu0
        %v1210 = vadd.f32 %v1117, %v1209
        %v1211 = vpop.f32.mrb[0].mxu0
        %v1212 = vpop.f32.mrb[0].mxu0
        %1213 = vdwg.mxu0
        %1214 = vmatprep.subr.bf16.mxu0 %v1157
        %1215 = vmatpush1.bf16.msra.mxu0 %v1156
        %1216 = vmatprep.subr.bf16.mxu0 %v1161
        %1217 = vmatpush1.bf16.msra.mxu0 %v1160
        %1218 = vmatprep.subr.bf16.mxu0 0
        %1219 = vmatpush1.bf16.msra.mxu0 0
        %1220 = vmatprep.subr.bf16.mxu0 0
        %1221 = vmatpush1.bf16.msra.mxu0 0
        %1222 = vmatprep.subr.bf16.mxu0 0
        %1223 = vmatpush1.bf16.msra.mxu0 0
        %1224 = vmatprep.subr.bf16.mxu0 0
        %1225 = vmatpush1.bf16.msra.mxu0 0
        %1226 = vmatprep.subr.bf16.mxu0 0
        %1227 = vmatpush1.bf16.msra.mxu0 0
        %1228 = vmatprep.subr.bf16.mxu0 0
        %1229 = vmatpush1.bf16.msra.mxu0 0
        %1230 = vmatprep.subr.bf16.mxu0 0
        %1231 = vmatpush1.bf16.msra.mxu0 0
        %1232 = vmatprep.subr.bf16.mxu0 0
        %1233 = vmatpush1.bf16.msra.mxu0 0
        %1234 = vmatprep.subr.bf16.mxu0 0
        %1235 = vmatpush1.bf16.msra.mxu0 0
        %1236 = vmatprep.subr.bf16.mxu0 0
        %1237 = vmatpush1.bf16.msra.mxu0 0
        %1238 = vmatprep.subr.bf16.mxu0 0
        %1239 = vmatpush1.bf16.msra.mxu0 0
        %1240 = vmatprep.subr.bf16.mxu0 0
        %1241 = vmatpush1.bf16.msra.mxu0 0
        %1242 = vmatprep.subr.bf16.mxu0 0
        %1243 = vmatpush1.bf16.msra.mxu0 0
        %1244 = vmatprep.subr.bf16.mxu0 0
        %1245 = vmatpush1.bf16.msra.mxu0 0
        %1246 = vmatprep.mubr.bf16.mxu0 0
        %1247 = vmatmul.mubr.bf16.gmra.mrb[0].mxu0 %v1171
        %v1248 = vpop.f32.mrb[0].mxu0
        %v1249 = vadd.f32 %v1121, %v1248
        %v1250 = vpop.f32.mrb[0].mxu0
        %v1251 = vadd.f32 %v1125, %v1250
        %v1252 = vpop.f32.mrb[0].mxu0
        %v1253 = vpop.f32.mrb[0].mxu0
        %1254 = vdwg.mxu0
        %1255 = vst [vmem:[%s505] sm:$0xff] %v1208
        %1256 = vst [vmem:[%s505 + $0x8] sm:$0xff] %v1210
        %1257 = vst [vmem:[%s505 + $0x10] sm:$0xff] %v1249
        %1258 = vst [vmem:[%s505 + $0x18] sm:$0xff] %v1251
        %s1259 = sand.u32 %s261, 1
        %s1260 = scalar_lea.sflag [#allocation19], %s1259
        %s1261 = sand.u32 %s261, 1
        %s1262 = smul.addr %s1261, 32
        %s1263 = scalar_lea.vmem [#allocation18], %s1262
        // Predicated region
        $region93: #{recipe_completion_forward.1} parent=55 // pred_check
          %p1264 = pneg %p245
        $region94: #{recipe_completion_forward.1} parent=55 // pred_check_branch
          %1266 = sbr.rel (%p1264) target = $region96
        $region95: #{recipe_completion_forward.1} parent=55 // pred_region
          %s1268 = ssub.s32 128, 128
          %1269 = vsyncadd [#allocation4], %s1268
          %s1271 = sshll.u32 [#allocation17], 4
          %s1272 = int_to_ptr.vmem [resolvable:$true] %s1271
          %1274 = dma.vmem_to_hbm [thread:$0]  %s1272, 128, %s9, [#allocation4]
        $region96: #{recipe_completion_forward.1} parent=55 // pred_fallthru
          _
        // Predicated region
        $region97: #{recipe_completion_forward.1} parent=55 // pred_check
          %p1275 = pneg %p271
        $region98: #{recipe_completion_forward.1} parent=55 // pred_check_branch
          %1277 = sbr.rel (%p1275) target = $region100
        $region99: #{recipe_completion_forward.1} parent=55 // pred_region
          %s1278 = smul.u32 4, %s33
          %s1280 = ssub.s32 512, 512
          %1281 = vsyncadd %s1260, %s1280
          %s1282 = smul.addr %s1278, 128
          %s1283 = scalar_lea.hbm %s10, %s1282
          %s1285 = sshll.u32 %s1263, 4
          %s1286 = int_to_ptr.vmem [resolvable:$true] %s1285
          %1288 = dma.vmem_to_hbm [thread:$0]  %s1286, 512, %s1283, %s1260
        $region100: #{recipe_completion_forward.1} parent=55 // pred_fallthru
          _
        // Predicated region
        $region101: #{recipe_completion_forward.1} parent=55 // pred_check
          %p1289 = pneg %p245
        $region102: #{recipe_completion_forward.1} parent=55 // pred_check_branch
          %1291 = sbr.rel (%p1289) target = $region104
        $region103: #{recipe_completion_forward.1} parent=55 // pred_region
          %1292 = dma.done [#allocation4], 128
        $region104: #{recipe_completion_forward.1} parent=55 // pred_fallthru
          _
      $region56: #{recipe_completion_forward.1} parent=5 // pred_fallthru
        _
      %p1293 = scmp.le.s32.totalorder 2, %s28
      // Predicated region
      $region105: #{recipe_completion_forward.1} parent=5 // pred_check
        %p1294 = pneg %p1293
      $region106: #{recipe_completion_forward.1} parent=5 // pred_check_branch
        %1296 = sbr.rel (%p1294) target = $region108
      $region107: #{recipe_completion_forward.1} parent=5 // pred_region
        %s1297 = ssub.s32 %s28, 2
        // Predicated region
        $region109: #{recipe_completion_forward.1} parent=107 // pred_check
          %p1298 = pneg %p277
        $region110: #{recipe_completion_forward.1} parent=107 // pred_check_branch
          %1300 = sbr.rel (%p1298) target = $region112
        $region111: #{recipe_completion_forward.1} parent=107 // pred_region
          %s1301 = sand.u32 %s262, 1
          %s1302 = scalar_lea.sflag [#allocation19], %s1301
          %s1303 = sand.u32 %s262, 1
          %s1304 = smul.addr %s1303, 32
          %s1305 = scalar_lea.vmem [#allocation18], %s1304
          %1306 = dma.done %s1302, 512
        $region112: #{recipe_completion_forward.1} parent=107 // pred_fallthru
          _
      $region108: #{recipe_completion_forward.1} parent=5 // pred_fallthru
        _
    $region6: #{recipe_completion_forward.1} parent=1 // loop_footer
      %s32 = sadd.s32 1, %s28
    $region7: #{recipe_completion_forward.1} parent=1 // loop_footer_branch
      %27 = sbr.rel target = $region3
    $region8: #{recipe_completion_forward.1} parent=1 // loop_exit
      _
    %1307 = vsyncpa [#allocation3], 1
    %s1308 = scalar_lea.sflag [#allocation3], 1
    %1309 = vsyncpa %s1308, 1
    %1310 = vsyncpa [#allocation6], 1
    %1311 = vsyncpa [#allocation9], 1
    %1312 = vsyncpa [#allocation12], 1
    %1313 = vsyncpa [#allocation15], 1
    %s1314 = scalar_lea.sflag [#allocation15], 1
    %1315 = vsyncpa %s1314, 1
    %1316 = vsyncpa [#allocation4], 1
    %s1317 = scalar_lea.sflag [#allocation4], 1
    %1318 = vsyncpa %s1317, 1
    %1319 = vsyncpa [#allocation19], 1
    %s1320 = scalar_lea.sflag [#allocation19], 1
    %1321 = vsyncpa %s1320, 1

</llo_original>
